<compile_context>
chip_gen: v7x
topology: tpu7x:2x2x1
jax: 0.10.0
libtpu: 0.0.40
codegen_flags: <defaults>
</compile_context>

<pallas_src>
import jax
import jax.numpy as jnp
from jax.experimental import pallas as pl
from jax.experimental.pallas import tpu as pltpu


_SUBLANE = 8                          # TPU sublane width (second-to-last dim)
_MAX_TB = 1024                        # rows per tile cap (roofline plateau)
_MAX_TC = 2048                        # class-axis tile cap (multiple of 128)
_TILE_VMEM_BUDGET = 20 * 1024 * 1024  # bytes for all (double-buffered) tiles
_PALLAS_MIN_ELEMENTS = 1 << 16        # below this, plain XLA beats kernel launch


def _round_up(x, m):
    return ((x + m - 1) // m) * m


def _temperature_scaling_kernel(inv_t_ref, x_ref, o_ref):
    # inv_t_ref: (1,) f32 scalar in SMEM (exact reciprocal of the temperature).
    # x_ref / o_ref: (TB, TC) tile in VMEM, caller's dtype.
    inv_t = inv_t_ref[0]
    x = x_ref[...].astype(jnp.float32)            # in-register upcast
    o_ref[...] = (x * inv_t).astype(o_ref.dtype)  # pure VPU mul, downcast on store


def _temperature_scale_2d(x, inv_temperature):
    B, C = x.shape
    itemsize = jnp.dtype(x.dtype).itemsize

    # Class-axis tile: full C when it fits the cap (legal for any C since the
    # block dim equals the array dim), else 2048-lane (128-multiple) tiles;
    # the partial last column block is masked by Pallas.
    tc = C if C <= _MAX_TC else _MAX_TC

    # Row tile: 2x double-buffered input + output tiles in the I/O dtype plus
    # ~8 B/elem headroom for the in-kernel f32 intermediates must fit budget.
    bytes_per_row = max(tc * (4 * itemsize + 8), 1)
    tb = (_TILE_VMEM_BUDGET // bytes_per_row) // _SUBLANE * _SUBLANE
    tb = max(_SUBLANE, min(tb, _MAX_TB))
    if B <= _SUBLANE:
        tb = B                                   # block dim == full array dim
    else:
        tb = min(tb, _round_up(B, _SUBLANE))     # don't process tons of dead rows

    grid = (pl.cdiv(B, tb), pl.cdiv(C, tc))      # partial edge blocks are masked
    inv_t = jnp.asarray(inv_temperature, jnp.float32).reshape((1,))

    return pl.pallas_call(
        _temperature_scaling_kernel,
        out_shape=jax.ShapeDtypeStruct((B, C), x.dtype),
        grid=grid,
        in_specs=[
            pl.BlockSpec(memory_space=pltpu.MemorySpace.SMEM),  # scalar 1/T
            pl.BlockSpec((tb, tc), lambda i, j: (i, j)),
        ],
        out_specs=pl.BlockSpec((tb, tc), lambda i, j: (i, j)),
        compiler_params=pltpu.CompilerParams(
            dimension_semantics=("parallel", "parallel"),  # megacore-shardable
            vmem_limit_bytes=32 * 1024 * 1024,             # safe on 64 MiB v7x too
        ),
    )(inv_t, x)


class TemperatureScaling:
    """JAX/Pallas equivalent of the PyTorch TemperatureScaling module."""

    def __init__(self, temperature=1.0):
        self.temperature = jnp.float32(temperature)

    def __call__(self, inputs, *, force_pallas=False):
        inv_t = jnp.float32(1.0) / self.temperature  # exact f32 reciprocal, once
        if inputs.ndim == 1:
            x2 = inputs.reshape((1, inputs.shape[-1]))
        else:
            x2 = inputs.reshape((-1, inputs.shape[-1]))

        if not force_pallas and x2.size < _PALLAS_MIN_ELEMENTS:
            # Launch + per-step overhead dominates a 1-flop/element op here.
            out2 = (x2.astype(jnp.float32) * inv_t).astype(x2.dtype)
        else:
            out2 = _temperature_scale_2d(x2, inv_t)
        return out2.reshape(inputs.shape)


if __name__ == "__main__":
    key = jax.random.PRNGKey(0)
    model = TemperatureScaling(temperature=2.5)
    inv_t = jnp.float32(1.0) / jnp.float32(2.5)

    # Small shape with B % 8 != 0 and C % 128 != 0: exercises the partial
    # (masked) edge blocks -- no pad / slice in the wrapper any more.
    B, C = 10, 48
    x = jax.random.normal(key, (B, C), dtype=jnp.float32)

    # f32 path through the Pallas kernel.
    out = jax.block_until_ready(model(x, force_pallas=True))
    ref = x / jnp.float32(2.5)
    assert out.shape == x.shape, (out.shape, x.shape)
    assert out.dtype == x.dtype, (out.dtype, x.dtype)
    assert jnp.allclose(out, ref, atol=1e-6, rtol=1e-6), "f32 mismatch vs reference"

    # bf16 path exercises the in-kernel up/down cast (I/O stays bf16).
    x_bf = x.astype(jnp.bfloat16)
    out_bf = jax.block_until_ready(model(x_bf, force_pallas=True))
    ref_bf = (x_bf.astype(jnp.float32) * inv_t).astype(jnp.bfloat16)
    assert out_bf.dtype == jnp.bfloat16
    assert jnp.allclose(out_bf.astype(jnp.float32), ref_bf.astype(jnp.float32),
                        atol=1e-2, rtol=1e-2), "bf16 mismatch vs reference"

    # Default path short-circuits tiny inputs to plain XLA; must match too.
    out_sc = jax.block_until_ready(model(x))
    assert jnp.allclose(out_sc, ref, atol=1e-6, rtol=1e-6), "short-circuit mismatch"

    print("KERNEL_OK")
</pallas_src>

<mosaic_0001>
module attributes {stable_mosaic.version = 11 : i64} {
  func.func @_temperature_scaling_kernel(%arg0: i32, %arg1: i32, %arg2: memref<1xf32, #tpu.memory_space<smem>>, %arg3: memref<16x48xf32, #tpu.memory_space<vmem>>, %arg4: memref<16x48xf32, #tpu.memory_space<vmem>>) attributes {dimension_semantics = [#tpu.dimension_semantics<parallel>, #tpu.dimension_semantics<parallel>], iteration_bounds = array<i64: 1, 1>, scalar_prefetch = 0 : i64, scratch_operands = 0 : i64, tpu.core_type = #tpu.core_type<tc>, window_params = [{transform_indices = @transform_0, window_bounds = array<i64: 1>}, {transform_indices = @transform_1, window_bounds = array<i64: 16, 48>}, {transform_indices = @transform_2, window_bounds = array<i64: 16, 48>}]} {
    %c0 = arith.constant 0 : index
    %0 = memref.load %arg2[%c0] : memref<1xf32, #tpu.memory_space<smem>>
    %c0_0 = arith.constant 0 : index
    %c0_1 = arith.constant 0 : index
    %1 = vector.load %arg3[%c0_0, %c0_1] : memref<16x48xf32, #tpu.memory_space<vmem>>, vector<16x48xf32>
    %2 = vector.broadcast %0 : f32 to vector<16x48xf32>
    %3 = arith.mulf %1, %2 : vector<16x48xf32>
    %c0_2 = arith.constant 0 : index
    %c0_3 = arith.constant 0 : index
    %4 = vector.load %arg4[%c0_2, %c0_3] : memref<16x48xf32, #tpu.memory_space<vmem>>, vector<16x48xf32>
    tpu.vector_store %arg4[%c0_2, %c0_3], %3 {strides = array<i32>} : memref<16x48xf32, #tpu.memory_space<vmem>>, vector<16x48xf32>,
    return
  }
  func.func @transform_0(%arg0: i32, %arg1: i32) -> i32 {
    %c0_i32 = arith.constant 0 : i32
    %c0_i32_0 = arith.constant 0 : i32
    return %c0_i32 : i32
  }
  func.func @transform_1(%arg0: i32, %arg1: i32) -> (i32, i32) {
    %c0_i32 = arith.constant 0 : i32
    return %arg0, %arg1 : i32, i32
  }
  func.func @transform_2(%arg0: i32, %arg1: i32) -> (i32, i32) {
    %c0_i32 = arith.constant 0 : i32
    return %arg0, %arg1 : i32, i32
  }
}

</mosaic_0001>

<llo_original>
// kernel: tpu_custom_call.1
$region0: #{tpu_custom_call.1}
  #allocation0 [shape = 'u32[]', space=smem, size = 0x4, offset = 0x4, fixed_abs, tag = 'smem constant byte address 0x4 - core index']
  #allocation1 [shape = 'u32[144,128]{1,0:T(1,128)}', space=vmem, size = 0x12000, scoped, tag = 'internal scratch']
  #allocation2 [shape = 'f32[1]{0:T(128)S(6)}', space=smem, size = 0x200, scoped, tag = 'scoped memory for tpu_custom_call.1']
  %s0 = inlined_call_operand.<no memory space> [shape: f32[1], index: 0, kind: input, shape index: {}]
  %s1 = inlined_call_operand.hbm [shape: f32[10,48], index: 1, kind: input, shape index: {}]
  %s2 = inlined_call_operand.hbm [shape: f32[10,48], index: 2, kind: output, shape index: {}]
  %s3 = sld [smem:[#allocation0]]
  $region22: #{tpu_custom_call.1} parent=0
    _
  %s5 = ssub.s32 1, %s3
  %s6 = scalar_select 0, %s5, %s3
  %7 = sst [smem:[#allocation2]] %s0
  $region1: #{tpu_custom_call.1} parent=0
    #allocation3 [shape = 'u8[8192]{0}', space=vmem, size = 0x2000, scoped, tag = 'input window, operand 1, single buffered']
    #allocation4 [shape = 's32[1]{0}', space=sflag, size = 0x4, scoped, tag = 'scoped memory for tpu_custom_call.1']
    #allocation5 [shape = 's32[1]{0}', space=sflag, size = 0x4, scoped, tag = 'scoped memory for tpu_custom_call.1']
    #allocation6 [shape = 'u8[8192]{0}', space=vmem, size = 0x2000, scoped, tag = 'output window, operand 0, single buffered']
    %8 = vsyncpa [#allocation4], 0
    %9 = vsyncpa [#allocation5], 0
    // Predicated region
    $region2: #{tpu_custom_call.1} parent=1 // pred_check
      _
    $region3: #{tpu_custom_call.1} parent=1 // pred_check_branch
      %11 = sbr.rel (0) target = $region5
    $region4: #{tpu_custom_call.1} parent=1 // pred_region
      _
    $region5: #{tpu_custom_call.1} parent=1 // pred_fallthru
      _
    // Predicated region
    $region6: #{tpu_custom_call.1} parent=1 // pred_check
      _
    $region7: #{tpu_custom_call.1} parent=1 // pred_check_branch
      %13 = sbr.rel (0) target = $region9
    $region8: #{tpu_custom_call.1} parent=1 // pred_region
      %s15 = ssub.s32 256, 256
      %16 = vsyncadd [#allocation4], %s15
      %s17 = sshll.u32 [#allocation3], 4
      %s18 = int_to_ptr.vmem [resolvable:$true] %s17
      %23 = dma.hbm_to_vmem [thread:$0]  %s1, 256, %s18, [#allocation4], 128, 128, 8
    $region9: #{tpu_custom_call.1} parent=1 // pred_fallthru
      _
    // Predicated region
    $region10: #{tpu_custom_call.1} parent=1 // pred_check
      _
    $region11: #{tpu_custom_call.1} parent=1 // pred_check_branch
      %25 = sbr.rel (0) target = $region13
    $region12: #{tpu_custom_call.1} parent=1 // pred_region
      %26 = dma.done [#allocation4], 256
    $region13: #{tpu_custom_call.1} parent=1 // pred_fallthru
      _
    %s27 = sld [smem:[#allocation2]]
    %v28 = vld [vmem:[#allocation3] sm:$0xff]
    %v29 = vld [vmem:[#allocation3 + $0x8] sm:$0xff]
    %v30 = vstv %s27
    %v31 = vmul.f32 %v28, %v30
    %v32 = vmul.f32 %v29, %v30
    %vm33 = vcmask 392192
    %34 = vst.msk [vmem:[#allocation6] sm:$0xff] %vm33, %v31
    %35 = vst.msk [vmem:[#allocation6 + $0x8] sm:$0xff] %vm33, %v32
    // Predicated region
    $region14: #{tpu_custom_call.1} parent=1 // pred_check
      _
    $region15: #{tpu_custom_call.1} parent=1 // pred_check_branch
      %37 = sbr.rel (0) target = $region17
    $region16: #{tpu_custom_call.1} parent=1 // pred_region
      %s39 = ssub.s32 256, 256
      %40 = vsyncadd [#allocation5], %s39
      %s41 = sshll.u32 [#allocation6], 4
      %s42 = int_to_ptr.vmem [resolvable:$true] %s41
      %47 = dma.vmem_to_hbm [thread:$0]  %s42, 256, %s2, [#allocation5], 128, 128, 8
    $region17: #{tpu_custom_call.1} parent=1 // pred_fallthru
      _
    // Predicated region
    $region18: #{tpu_custom_call.1} parent=1 // pred_check
      _
    $region19: #{tpu_custom_call.1} parent=1 // pred_check_branch
      %49 = sbr.rel (0) target = $region21
    $region20: #{tpu_custom_call.1} parent=1 // pred_region
      %50 = dma.done [#allocation5], 256
    $region21: #{tpu_custom_call.1} parent=1 // pred_fallthru
      _
    %51 = vsyncpa [#allocation4], 1
    %52 = vsyncpa [#allocation5], 1

</llo_original>
